<compile_context>
chip_gen: v5e
topology: v5e:2x2
jax: 0.10.0
libtpu: 0.0.40
codegen_flags: <defaults>
</compile_context>

<pallas_src>
import functools

import numpy as np
import jax
import jax.numpy as jnp
from jax.experimental import pallas as pl
from jax.experimental.pallas import tpu as pltpu

CHANNEL2 = 16   # in_channels  (channel2)
CHANNEL3 = 16   # out_channels (channel3)
KSIZE = 8       # Conv1d kernel_size
POOL = 2        # MaxPool1d kernel_size == stride


def _encoder3_kernel(x_ref, w_ref, b_ref, sel_ref, o_ref, *, ksize, l_out, l_pool):
    """Fused Conv1d(k=8,s=1)+bias+ReLU+MaxPool1d(2,2) for a block of Bt batch elements.

    x_ref:   (Bt, C2, L)          input slab (VMEM, f32)
    w_ref:   (C3, K*C2)           flattened conv weight (bf16, resident)
    b_ref:   (C3, 1)              bias column (f32, resident)
    sel_ref: (L_out, 2*L_pool)    [even | odd] one-hot pooling selector (bf16, resident)
    o_ref:   (Bt, C3, L_pool)     pooled output (f32)
    """
    bt = x_ref.shape[0]

    # --- im2col: one (K*C2, Bt*L_out) bf16 slab (tap-major rows, batch-major lanes) ---
    slabs = []
    for b in range(bt):                                   # static unroll, Bt is small
        xb = x_ref[b]                                     # (C2, L) f32
        slab = jnp.concatenate([xb[:, k:k + l_out] for k in range(ksize)], axis=0)
        slabs.append(slab.astype(jnp.bfloat16))           # (K*C2, L_out) bf16
    cols = slabs[0] if bt == 1 else jnp.concatenate(slabs, axis=1)

    # --- Conv1d as ONE 128-deep MXU contraction; bias + ReLU stay f32 on the VPU ---
    y = jnp.dot(w_ref[...], cols, preferred_element_type=jnp.float32)  # (C3, Bt*L_out)
    y = jnp.maximum(y + b_ref[...], 0.0)
    y16 = y.astype(jnp.bfloat16)

    # --- MaxPool1d(k=2, s=2): per element, one matmul against the resident [even|odd]
    #     selector, then an elementwise max of the two 128-lane halves. ---
    sel = sel_ref[...]                                    # (L_out, 2*L_pool) bf16
    for b in range(bt):
        p = jnp.dot(y16[:, b * l_out:(b + 1) * l_out], sel,
                    preferred_element_type=jnp.float32)   # (C3, 2*L_pool) f32
        o_ref[b] = jnp.maximum(p[:, :l_pool], p[:, l_pool:])
    # TODO(synk): training-mode Dropout(0.5) would use pltpu.prng_seed/prng_random_bits;
    # eval-mode forward is identity, so nothing is emitted here.


def prepare_params(conv_w, conv_b, in_length):
    """One-time prep (hoisted out of the hot path): flattened bf16 weight, column bias,
    and the resident bf16 max-pool selector."""
    c3, c2, k = conv_w.shape
    l_out = in_length - k + 1
    l_pool = l_out // POOL
    # im2col row order is (tap k, in-channel c) -> flatten the weight the same way.
    w_flat = jnp.transpose(conv_w, (0, 2, 1)).reshape(c3, k * c2).astype(jnp.bfloat16)
    b_col = conv_b.reshape(c3, 1).astype(jnp.float32)
    rows = np.arange(l_out)[:, None]
    cols = np.arange(l_pool)[None, :]
    sel_np = np.concatenate([rows == 2 * cols, rows == 2 * cols + 1], axis=1)
    sel = jnp.asarray(sel_np.astype(np.float32), dtype=jnp.bfloat16)  # exact 0/1 in bf16
    return w_flat, b_col, sel


def _batch_block(bsz):
    """Batch elements per grid step: amortize per-step overhead but keep >= 2 blocks
    so v7x's two TensorCores both get work."""
    if bsz >= 16:
        return 8
    return max(1, bsz // 2) if bsz >= 2 else 1


def encoder3_forward(x, w_flat, b_col, sel):
    """x: (B, C2, L) f32 -> (B, C3, (L - K + 1) // 2) f32."""
    bsz, c2, l = x.shape
    c3, kc2 = w_flat.shape
    k = kc2 // c2
    l_out = l - k + 1
    l_pool = l_out // POOL

    bt = _batch_block(bsz)
    nblk = pl.cdiv(bsz, bt)
    bpad = nblk * bt
    if bpad != bsz:
        x = jnp.pad(x, ((0, bpad - bsz), (0, 0), (0, 0)))

    kernel = functools.partial(_encoder3_kernel, ksize=k, l_out=l_out, l_pool=l_pool)
    cost = pl.CostEstimate(
        flops=2 * bpad * c3 * (kc2 * l_out + l_out * 2 * l_pool),
        transcendentals=0,
        bytes_accessed=(bpad * c2 * l * 4 + w_flat.size * 2 + b_col.size * 4
                        + sel.size * 2 + bpad * c3 * l_pool * 4),
    )
    out = pl.pallas_call(
        kernel,
        out_shape=jax.ShapeDtypeStruct((bpad, c3, l_pool), jnp.float32),
        grid=(nblk,),
        in_specs=[
            pl.BlockSpec((bt, c2, l), lambda i: (i, 0, 0)),
            pl.BlockSpec((c3, kc2), lambda i: (0, 0)),            # resident weight
            pl.BlockSpec((c3, 1), lambda i: (0, 0)),              # resident bias
            pl.BlockSpec((l_out, 2 * l_pool), lambda i: (0, 0)),  # resident pool selector
        ],
        out_specs=pl.BlockSpec((bt, c3, l_pool), lambda i: (i, 0, 0)),
        compiler_params=pltpu.CompilerParams(
            dimension_semantics=("parallel",)),   # v7x: batch blocks shard across both TCs
        cost_estimate=cost,
    )(x.astype(jnp.float32), w_flat, b_col, sel)
    return out[:bsz] if bpad != bsz else out


def _reference(x, conv_w, conv_b):
    """Plain-JAX f32 reference of eval-mode Encoder3 (Dropout = identity)."""
    bsz, _, l = x.shape
    c3, _, k = conv_w.shape
    l_out = l - k + 1
    cols = jnp.stack([x[:, :, t:t + l_out] for t in range(k)], axis=-1)   # (B, C2, Lout, K)
    y = jnp.einsum("bclk,dck->bdl", cols, conv_w) + conv_b[None, :, None]
    y = jnp.maximum(y, 0.0)
    l_pool = l_out // POOL
    return jnp.max(y[:, :, :POOL * l_pool].reshape(bsz, c3, l_pool, POOL), axis=-1)


if __name__ == "__main__":
    key = jax.random.PRNGKey(0)
    kx, kw, kb = jax.random.split(key, 3)
    B, L = 2, 263                        # Lout = 256, Lpool = 128 -> fully lane-dense output
    x = jax.random.normal(kx, (B, CHANNEL2, L), jnp.float32)
    conv_w = 0.1 * jax.random.normal(kw, (CHANNEL3, CHANNEL2, KSIZE), jnp.float32)
    conv_b = 0.1 * jax.random.normal(kb, (CHANNEL3,), jnp.float32)

    w_flat, b_col, sel = prepare_params(conv_w, conv_b, L)    # one-time hoisted prep
    fwd = jax.jit(encoder3_forward)
    out = fwd(x, w_flat, b_col, sel)
    jax.block_until_ready(out)

    assert out.shape == (B, CHANNEL3, (L - KSIZE + 1) // POOL)
    ref = _reference(x, conv_w, conv_b)
    # bf16 MXU operands (per perf review) -> validate against the f32 reference at
    # bf16-level tolerance; selectors/pooling are exact, error comes from input/weight rounding.
    assert jnp.allclose(out, ref, rtol=1e-2, atol=1e-2), float(jnp.max(jnp.abs(out - ref)))
    print("KERNEL_OK")
</pallas_src>

<mosaic_0001>
module attributes {stable_mosaic.version = 11 : i64} {
  func.func @_encoder3_kernel(%arg0: i32, %arg1: memref<1x16x263xf32, #tpu.memory_space<vmem>>, %arg2: memref<16x128xbf16, #tpu.memory_space<vmem>>, %arg3: memref<16x1xf32, #tpu.memory_space<vmem>>, %arg4: memref<256x256xbf16, #tpu.memory_space<vmem>>, %arg5: memref<1x16x128xf32, #tpu.memory_space<vmem>>) attributes {dimension_semantics = [#tpu.dimension_semantics<parallel>], iteration_bounds = array<i64: 2>, scalar_prefetch = 0 : i64, scratch_operands = 0 : i64, tpu.core_type = #tpu.core_type<tc>, window_params = [{transform_indices = @transform_0, window_bounds = array<i64: 1, 16, 263>}, {pipeline_mode = #tpu.pipeline_mode<synchronous>, transform_indices = @transform_1, window_bounds = array<i64: 16, 128>}, {pipeline_mode = #tpu.pipeline_mode<synchronous>, transform_indices = @transform_2, window_bounds = array<i64: 16, 1>}, {pipeline_mode = #tpu.pipeline_mode<synchronous>, transform_indices = @transform_3, window_bounds = array<i64: 256, 256>}, {transform_indices = @transform_4, window_bounds = array<i64: 1, 16, 128>}]} {
    %c0 = arith.constant 0 : index
    %c0_0 = arith.constant 0 : index
    %c0_1 = arith.constant 0 : index
    %0 = vector.load %arg1[%c0, %c0_0, %c0_1] : memref<1x16x263xf32, #tpu.memory_space<vmem>>, vector<1x16x263xf32>
    %1 = vector.shape_cast %0 : vector<1x16x263xf32> to vector<16x263xf32>
    %2 = vector.extract_strided_slice %1 {offsets = [0, 0], sizes = [16, 256], strides = [1, 1]} : vector<16x263xf32> to vector<16x256xf32>
    %3 = vector.extract_strided_slice %1 {offsets = [0, 1], sizes = [16, 256], strides = [1, 1]} : vector<16x263xf32> to vector<16x256xf32>
    %4 = vector.extract_strided_slice %1 {offsets = [0, 2], sizes = [16, 256], strides = [1, 1]} : vector<16x263xf32> to vector<16x256xf32>
    %5 = vector.extract_strided_slice %1 {offsets = [0, 3], sizes = [16, 256], strides = [1, 1]} : vector<16x263xf32> to vector<16x256xf32>
    %6 = vector.extract_strided_slice %1 {offsets = [0, 4], sizes = [16, 256], strides = [1, 1]} : vector<16x263xf32> to vector<16x256xf32>
    %7 = vector.extract_strided_slice %1 {offsets = [0, 5], sizes = [16, 256], strides = [1, 1]} : vector<16x263xf32> to vector<16x256xf32>
    %8 = vector.extract_strided_slice %1 {offsets = [0, 6], sizes = [16, 256], strides = [1, 1]} : vector<16x263xf32> to vector<16x256xf32>
    %9 = vector.extract_strided_slice %1 {offsets = [0, 7], sizes = [16, 256], strides = [1, 1]} : vector<16x263xf32> to vector<16x256xf32>
    %10 = tpu.concatenate %2, %3, %4, %5, %6, %7, %8, %9 in 0 : vector<16x256xf32>, vector<16x256xf32>, vector<16x256xf32>, vector<16x256xf32>, vector<16x256xf32>, vector<16x256xf32>, vector<16x256xf32>, vector<16x256xf32> -> vector<128x256xf32>
    %11 = arith.truncf %10 : vector<128x256xf32> to vector<128x256xbf16>
    %c0_2 = arith.constant 0 : index
    %c0_3 = arith.constant 0 : index
    %12 = vector.load %arg2[%c0_2, %c0_3] : memref<16x128xbf16, #tpu.memory_space<vmem>>, vector<16x128xbf16>
    %cst = arith.constant dense<0.000000e+00> : vector<16x256xf32>
    %13 = tpu.matmul %12, %11, %cst {dimension_numbers = #tpu.dot_dimension_numbers<[1], [0], [0], [1], [0, 0, 1, 1], [], []>} : vector<16x128xbf16>, vector<128x256xbf16>, vector<16x256xf32> -> vector<16x256xf32>
    %c0_4 = arith.constant 0 : index
    %c0_5 = arith.constant 0 : index
    %14 = vector.load %arg3[%c0_4, %c0_5] : memref<16x1xf32, #tpu.memory_space<vmem>>, vector<16x1xf32>
    %15 = vector.broadcast %14 : vector<16x1xf32> to vector<16x256xf32>
    %16 = arith.addf %13, %15 : vector<16x256xf32>
    %cst_6 = arith.constant 0.000000e+00 : f32
    %17 = vector.broadcast %cst_6 : f32 to vector<16x256xf32>
    %18 = arith.maximumf %16, %17 : vector<16x256xf32>
    %19 = arith.truncf %18 : vector<16x256xf32> to vector<16x256xbf16>
    %c0_7 = arith.constant 0 : index
    %c0_8 = arith.constant 0 : index
    %20 = vector.load %arg4[%c0_7, %c0_8] : memref<256x256xbf16, #tpu.memory_space<vmem>>, vector<256x256xbf16>
    %cst_9 = arith.constant dense<0.000000e+00> : vector<16x256xf32>
    %21 = tpu.matmul %19, %20, %cst_9 {dimension_numbers = #tpu.dot_dimension_numbers<[1], [0], [0], [1], [0, 0, 1, 1], [], []>} : vector<16x256xbf16>, vector<256x256xbf16>, vector<16x256xf32> -> vector<16x256xf32>
    %22 = vector.extract_strided_slice %21 {offsets = [0, 0], sizes = [16, 128], strides = [1, 1]} : vector<16x256xf32> to vector<16x128xf32>
    %23 = vector.extract_strided_slice %21 {offsets = [0, 128], sizes = [16, 128], strides = [1, 1]} : vector<16x256xf32> to vector<16x128xf32>
    %24 = arith.maximumf %22, %23 : vector<16x128xf32>
    %c0_10 = arith.constant 0 : index
    %c0_11 = arith.constant 0 : index
    %c0_12 = arith.constant 0 : index
    %25 = vector.load %arg5[%c0_10, %c0_11, %c0_12] : memref<1x16x128xf32, #tpu.memory_space<vmem>>, vector<1x16x128xf32>
    %26 = vector.shape_cast %25 : vector<1x16x128xf32> to vector<16x128xf32>
    %27 = vector.shape_cast %24 : vector<16x128xf32> to vector<1x16x128xf32>
    tpu.vector_store %arg5[%c0_10, %c0_11, %c0_12], %27 {strides = array<i32>} : memref<1x16x128xf32, #tpu.memory_space<vmem>>, vector<1x16x128xf32>,
    return
  }
  func.func @transform_0(%arg0: i32) -> (i32, i32, i32) {
    %c0_i32 = arith.constant 0 : i32
    %c0_i32_0 = arith.constant 0 : i32
    %c0_i32_1 = arith.constant 0 : i32
    return %arg0, %c0_i32, %c0_i32_0 : i32, i32, i32
  }
  func.func @transform_1(%arg0: i32) -> (i32, i32) {
    %c0_i32 = arith.constant 0 : i32
    %c0_i32_0 = arith.constant 0 : i32
    %c0_i32_1 = arith.constant 0 : i32
    return %c0_i32, %c0_i32_0 : i32, i32
  }
  func.func @transform_2(%arg0: i32) -> (i32, i32) {
    %c0_i32 = arith.constant 0 : i32
    %c0_i32_0 = arith.constant 0 : i32
    %c0_i32_1 = arith.constant 0 : i32
    return %c0_i32, %c0_i32_0 : i32, i32
  }
  func.func @transform_3(%arg0: i32) -> (i32, i32) {
    %c0_i32 = arith.constant 0 : i32
    %c0_i32_0 = arith.constant 0 : i32
    %c0_i32_1 = arith.constant 0 : i32
    return %c0_i32, %c0_i32_0 : i32, i32
  }
  func.func @transform_4(%arg0: i32) -> (i32, i32, i32) {
    %c0_i32 = arith.constant 0 : i32
    %c0_i32_0 = arith.constant 0 : i32
    %c0_i32_1 = arith.constant 0 : i32
    return %arg0, %c0_i32, %c0_i32_0 : i32, i32, i32
  }
}

</mosaic_0001>

<llo_original>
// kernel: encoder3_forward.1
$region0: #{encoder3_forward.1}
  #allocation0 [shape = 'u32[]', space=smem, size = 0x4, offset = 0x4, fixed_abs, tag = 'smem constant byte address 0x4 - core index']
  #allocation1 [shape = 'u32[72,128]{1,0:T(1,128)}', space=vmem, size = 0x9000, scoped, tag = 'internal scratch']
  %s0 = inlined_call_operand.hbm [shape: f32[2,16,263], index: 0, kind: input, shape index: {}]
  %s1 = inlined_call_operand.vmem [shape: bf16[16,128], index: 1, kind: input, shape index: {}]
  %s2 = inlined_call_operand.vmem [shape: f32[16,1], index: 2, kind: input, shape index: {}]
  %s3 = inlined_call_operand.hbm [shape: bf16[256,256], index: 3, kind: input, shape index: {}]
  %s4 = inlined_call_operand.hbm [shape: f32[2,16,128], index: 4, kind: output, shape index: {}]
  %s5 = sld [smem:[#allocation0]]
  $region57: #{encoder3_forward.1} parent=0
    _
  %s7 = ssub.s32 1, %s5
  %s8 = scalar_select 0, %s7, %s5
  $region1: #{encoder3_forward.1} parent=0
    #allocation2 [shape = 'u8[49152]{0}', space=vmem, size = 0xc000, scoped, tag = 'input window, operand 0']
    #allocation3 [shape = 's32[2]{0}', space=sflag, size = 0x8, scoped, tag = 'scoped memory for encoder3_forward.1']
    #allocation4 [shape = 's32[2]{0}', space=sflag, size = 0x8, scoped, tag = 'scoped memory for encoder3_forward.1']
    #allocation5 [shape = 'u8[131072]{0}', space=vmem, size = 0x20000, scoped, tag = 'input window, operand 3, single buffered']
    #allocation6 [shape = 's32[1]{0}', space=sflag, size = 0x4, scoped, tag = 'scoped memory for encoder3_forward.1']
    #allocation7 [shape = 'u8[16384]{0}', space=vmem, size = 0x4000, scoped, tag = 'output window, operand 0']
    %9 = vsyncpa [#allocation3], 0
    %s10 = scalar_lea.sflag [#allocation3], 1
    %11 = vsyncpa %s10, 0
    %12 = vsyncpa [#allocation6], 0
    %13 = vsyncpa [#allocation4], 0
    %s14 = scalar_lea.sflag [#allocation4], 1
    %15 = vsyncpa %s14, 0
    loop: start=0, step=1, limit=4
    $region2: #{encoder3_forward.1} parent=1 // loop_pre_header
      _
    $region3: #{encoder3_forward.1} parent=1 // loop_header
      %s17 = sphi 0, %s21
      %p18 = scmp.ge.s32.totalorder %s17, 4
      %s27 = sphi 0, %s29
      %s30 = sphi 0, %s27
      %s31 = sphi 0, %s30
      %s47 = sphi 0, %s31
      %s51 = sphi 0, %s51
      %s53 = sphi 0, %s51
      %s54 = sphi 0, %s53
      %s68 = sphi 0, %s54
      %s72 = sphi 0, %s72
      %s74 = sphi 0, %s72
      %s75 = sphi 0, %s74
      %s89 = sphi 0, %s75
      %s93 = sphi 0, %s93
      %s95 = sphi 0, %s93
      %s96 = sphi 0, %s95
      %s110 = sphi 0, %s96
      %s116 = sphi 0, %s118
      %s119 = sphi 0, %s116
      %s120 = sphi 0, %s119
      %s136 = sphi 0, %s120
    $region4: #{encoder3_forward.1} parent=1 // loop_header_branch
      %20 = sbr.rel (%p18) target = $region8
    $region5: #{encoder3_forward.1} parent=1 // loop_body
      %s22 = ssub.s32 %s17, 1
      %s23 = ssub.s32 %s17, 2
      %s24 = sadd.s32 %s17, 1
      %s25 = ssub.s32 %s17, %s24
      %p26 = scmp.eq.s32.totalorder %s25, 0
      %s28 = sadd.s32 %s27, 1
      %s29 = scalar_select %p26, %s27, %s28
      %p32 = pneg %p26
      %p33 = scmp.eq.s32.totalorder %s17, 1
      %p34 = por %p32, %p33
      %p35 = scmp.ne.s32.totalorder %s27, %s30
      %p36 = scmp.eq.s32.totalorder %s17, 0
      %p37 = por %p35, %p36
      %p38 = scmp.ne.s32.totalorder %s27, %s30
      %p39 = scmp.eq.s32.totalorder %s22, 1
      %p40 = por %p38, %p39
      %p41 = scmp.ne.s32.totalorder %s30, %s31
      %p42 = scmp.eq.s32.totalorder %s22, 0
      %p43 = por %p41, %p42
      %p44 = scmp.ne.s32.totalorder %s30, %s31
      %p45 = scmp.eq.s32.totalorder %s23, 1
      %p46 = por %p44, %p45
      %p48 = scmp.ne.s32.totalorder %s31, %s47
      %p49 = scmp.eq.s32.totalorder %s23, 0
      %p50 = por %p48, %p49
      %s52 = sadd.s32 %s51, 1
      %p55 = scmp.eq.s32.totalorder %s17, 1
      %p56 = scmp.ne.s32.totalorder %s51, %s53
      %p57 = scmp.eq.s32.totalorder %s17, 0
      %p58 = por %p56, %p57
      %p59 = scmp.ne.s32.totalorder %s51, %s53
      %p60 = scmp.eq.s32.totalorder %s22, 1
      %p61 = por %p59, %p60
      %p62 = scmp.ne.s32.totalorder %s53, %s54
      %p63 = scmp.eq.s32.totalorder %s22, 0
      %p64 = por %p62, %p63
      %p65 = scmp.ne.s32.totalorder %s53, %s54
      %p66 = scmp.eq.s32.totalorder %s23, 1
      %p67 = por %p65, %p66
      %p69 = scmp.ne.s32.totalorder %s54, %s68
      %p70 = scmp.eq.s32.totalorder %s23, 0
      %p71 = por %p69, %p70
      %s73 = sadd.s32 %s72, 1
      %p76 = scmp.eq.s32.totalorder %s17, 1
      %p77 = scmp.ne.s32.totalorder %s72, %s74
      %p78 = scmp.eq.s32.totalorder %s17, 0
      %p79 = por %p77, %p78
      %p80 = scmp.ne.s32.totalorder %s72, %s74
      %p81 = scmp.eq.s32.totalorder %s22, 1
      %p82 = por %p80, %p81
      %p83 = scmp.ne.s32.totalorder %s74, %s75
      %p84 = scmp.eq.s32.totalorder %s22, 0
      %p85 = por %p83, %p84
      %p86 = scmp.ne.s32.totalorder %s74, %s75
      %p87 = scmp.eq.s32.totalorder %s23, 1
      %p88 = por %p86, %p87
      %p90 = scmp.ne.s32.totalorder %s75, %s89
      %p91 = scmp.eq.s32.totalorder %s23, 0
      %p92 = por %p90, %p91
      %s94 = sadd.s32 %s93, 1
      %p97 = scmp.eq.s32.totalorder %s17, 1
      %p98 = scmp.ne.s32.totalorder %s93, %s95
      %p99 = scmp.eq.s32.totalorder %s17, 0
      %p100 = por %p98, %p99
      %p101 = scmp.ne.s32.totalorder %s93, %s95
      %p102 = scmp.eq.s32.totalorder %s22, 1
      %p103 = por %p101, %p102
      %p104 = scmp.ne.s32.totalorder %s95, %s96
      %p105 = scmp.eq.s32.totalorder %s22, 0
      %p106 = por %p104, %p105
      %p107 = scmp.ne.s32.totalorder %s95, %s96
      %p108 = scmp.eq.s32.totalorder %s23, 1
      %p109 = por %p107, %p108
      %p111 = scmp.ne.s32.totalorder %s96, %s110
      %p112 = scmp.eq.s32.totalorder %s23, 0
      %p113 = por %p111, %p112
      %s114 = ssub.s32 %s17, %s24
      %p115 = scmp.eq.s32.totalorder %s114, 0
      %s117 = sadd.s32 %s116, 1
      %s118 = scalar_select %p115, %s116, %s117
      %p121 = pneg %p115
      %p122 = scmp.eq.s32.totalorder %s17, 1
      %p123 = por %p121, %p122
      %p124 = scmp.ne.s32.totalorder %s116, %s119
      %p125 = scmp.eq.s32.totalorder %s17, 0
      %p126 = por %p124, %p125
      %p127 = scmp.ne.s32.totalorder %s116, %s119
      %p128 = scmp.eq.s32.totalorder %s22, 1
      %p129 = por %p127, %p128
      %p130 = scmp.ne.s32.totalorder %s119, %s120
      %p131 = scmp.eq.s32.totalorder %s22, 0
      %p132 = por %p130, %p131
      %p133 = scmp.ne.s32.totalorder %s119, %s120
      %p134 = scmp.eq.s32.totalorder %s23, 1
      %p135 = por %p133, %p134
      %p137 = scmp.ne.s32.totalorder %s120, %s136
      %p138 = scmp.eq.s32.totalorder %s23, 0
      %p139 = por %p137, %p138
      %p140 = scmp.le.s32.totalorder 1, %s17
      %p141 = scmp.lt.s32.totalorder %s17, 3
      %p142 = pnand %p140, %p141
      %p143 = pneg %p142
      // Predicated region
      $region9: #{encoder3_forward.1} parent=5 // pred_check
        _
      $region10: #{encoder3_forward.1} parent=5 // pred_check_branch
        %145 = sbr.rel (%p142) target = $region12
      $region11: #{encoder3_forward.1} parent=5 // pred_region
        %s146 = ssub.s32 %s17, 1
        // Predicated region
        $region13: #{encoder3_forward.1} parent=11 // pred_check
          %p147 = pneg %p64
        $region14: #{encoder3_forward.1} parent=11 // pred_check_branch
          %149 = sbr.rel (%p147) target = $region16
        $region15: #{encoder3_forward.1} parent=11 // pred_region
          _
        $region16: #{encoder3_forward.1} parent=11 // pred_fallthru
          _
        // Predicated region
        $region17: #{encoder3_forward.1} parent=11 // pred_check
          %p150 = pneg %p85
        $region18: #{encoder3_forward.1} parent=11 // pred_check_branch
          %152 = sbr.rel (%p150) target = $region20
        $region19: #{encoder3_forward.1} parent=11 // pred_region
          _
        $region20: #{encoder3_forward.1} parent=11 // pred_fallthru
          _
        // Predicated region
        $region21: #{encoder3_forward.1} parent=11 // pred_check
          %p153 = pneg %p106
        $region22: #{encoder3_forward.1} parent=11 // pred_check_branch
          %155 = sbr.rel (%p153) target = $region24
        $region23: #{encoder3_forward.1} parent=11 // pred_region
          %157 = vsyncadd [#allocation6], 0
          %s158 = sshll.u32 %s3, 4
          %s159 = int_to_ptr.hbm [resolvable:$true] %s158
          %s160 = sshll.u32 [#allocation5], 4
          %s161 = int_to_ptr.vmem [resolvable:$true] %s160
          %166 = dma.hbm_to_vmem [thread:$0]  %s159, 4096, %s161, [#allocation6], 128, 128, 8
        $region24: #{encoder3_forward.1} parent=11 // pred_fallthru
          _
      $region12: #{encoder3_forward.1} parent=5 // pred_fallthru
        _
      %p167 = scmp.lt.s32.totalorder %s17, 2
      // Predicated region
      $region25: #{encoder3_forward.1} parent=5 // pred_check
        %p168 = pneg %p167
      $region26: #{encoder3_forward.1} parent=5 // pred_check_branch
        %170 = sbr.rel (%p168) target = $region28
      $region27: #{encoder3_forward.1} parent=5 // pred_region
        // Predicated region
        $region29: #{encoder3_forward.1} parent=27 // pred_check
          %p171 = pneg %p37
        $region30: #{encoder3_forward.1} parent=27 // pred_check_branch
          %173 = sbr.rel (%p171) target = $region32
        $region31: #{encoder3_forward.1} parent=27 // pred_region
          %s174 = sand.u32 %s27, 1
          %s175 = scalar_lea.sflag [#allocation3], %s174
          %s176 = sand.u32 %s27, 1
          %s177 = smul.addr %s176, 48
          %s178 = scalar_lea.vmem [#allocation2], %s177
          %180 = vsyncadd %s175, 0
          %s181 = smul.addr %s17, 6
          %s182 = smul.addr %s181, 8
          %s183 = scalar_lea.hbm %s0, %s182
          %s184 = sshll.u32 %s183, 4
          %s185 = int_to_ptr.hbm [resolvable:$true] %s184
          %s186 = sshll.u32 %s178, 4
          %s187 = int_to_ptr.vmem [resolvable:$true] %s186
          %192 = dma.hbm_to_vmem [thread:$0]  %s185, 768, %s187, %s175, 384, 384, 24
        $region32: #{encoder3_forward.1} parent=27 // pred_fallthru
          _
      $region28: #{encoder3_forward.1} parent=5 // pred_fallthru
        _
      %p193 = scmp.le.s32.totalorder 1, %s17
      %p194 = scmp.lt.s32.totalorder %s17, 3
      %p195 = pnand %p193, %p194
      %p196 = pneg %p195
      // Predicated region
      $region33: #{encoder3_forward.1} parent=5 // pred_check
        _
      $region34: #{encoder3_forward.1} parent=5 // pred_check_branch
        %198 = sbr.rel (%p195) target = $region36
      $region35: #{encoder3_forward.1} parent=5 // pred_region
        %s199 = ssub.s32 %s17, 1
        %s200 = sand.u32 %s30, 1
        %s201 = scalar_lea.sflag [#allocation3], %s200
        %s202 = sand.u32 %s30, 1
        %s203 = smul.addr %s202, 48
        %s204 = scalar_lea.vmem [#allocation2], %s203
        // Predicated region
        $region37: #{encoder3_forward.1} parent=35 // pred_check
          %p205 = pneg %p43
        $region38: #{encoder3_forward.1} parent=35 // pred_check_branch
          %207 = sbr.rel (%p205) target = $region40
        $region39: #{encoder3_forward.1} parent=35 // pred_region
          %209 = dma.done %s201, 768
        $region40: #{encoder3_forward.1} parent=35 // pred_fallthru
          _
        // Predicated region
        $region41: #{encoder3_forward.1} parent=35 // pred_check
          %p210 = pneg %p106
        $region42: #{encoder3_forward.1} parent=35 // pred_check_branch
          %212 = sbr.rel (%p210) target = $region44
        $region43: #{encoder3_forward.1} parent=35 // pred_region
          %214 = dma.done [#allocation6], 4096
        $region44: #{encoder3_forward.1} parent=35 // pred_fallthru
          _
        %s215 = sand.u32 %s30, 1
        %s216 = scalar_lea.sflag [#allocation3], %s215
        %s217 = sand.u32 %s30, 1
        %s218 = smul.addr %s217, 48
        %s219 = scalar_lea.vmem [#allocation2], %s218
        %p220 = pneg %p43
        %p221 = pneg %p40
        %p222 = pneg %p64
        %p223 = pneg %p61
        %p224 = pneg %p85
        %p225 = pneg %p82
        %p226 = pneg %p106
        %p227 = pneg %p103
        %p228 = pneg %p132
        %p229 = pneg %p129
        %s230 = sand.u32 %s119, 1
        %s231 = scalar_lea.sflag [#allocation4], %s230
        %s232 = sand.u32 %s119, 1
        %s233 = smul.addr %s232, 16
        %s234 = scalar_lea.vmem [#allocation7], %s233
        %v235 = vld [vmem:[%s204] sm:$0xff]
        %v236 = vld [vmem:[%s204 + $0x8] sm:$0xff]
        %v237 = vld [vmem:[%s204 + $0x10] sm:$0xff]
        %v238 = vld [vmem:[%s204 + $0x18] sm:$0xff]
        %v239 = vld [vmem:[%s204 + $0x20] sm:$0xff]
        %v240 = vld [vmem:[%s204 + $0x28] sm:$0xff]
        %247 = vrot.lane.b32.xlu0 %v235, 127
        %v248 = vpop.permute.xlu0 %247
        %249 = vrot.lane.b32.xlu0 %v236, 127
        %v250 = vpop.permute.xlu0 %249
        %251 = vrot.lane.b32.xlu0 %v237, 127
        %v252 = vpop.permute.xlu0 %251
        %253 = vrot.lane.b32.xlu0 %v238, 127
        %v254 = vpop.permute.xlu0 %253
        %255 = vrot.lane.b32.xlu0 %v239, 127
        %v256 = vpop.permute.xlu0 %255
        %257 = vrot.lane.b32.xlu0 %v240, 127
        %v258 = vpop.permute.xlu0 %257
        %vm259 = vcmask 1039360
        %v260 = vsel %vm259, %v248, %v250
        %v261 = vsel %vm259, %v250, %v252
        %v262 = vsel %vm259, %v254, %v256
        %v263 = vsel %vm259, %v256, %v258
        %268 = vrot.lane.b32.xlu0 %v235, 126
        %v269 = vpop.permute.xlu0 %268
        %270 = vrot.lane.b32.xlu0 %v236, 126
        %v271 = vpop.permute.xlu0 %270
        %272 = vrot.lane.b32.xlu0 %v237, 126
        %v273 = vpop.permute.xlu0 %272
        %274 = vrot.lane.b32.xlu0 %v238, 126
        %v275 = vpop.permute.xlu0 %274
        %276 = vrot.lane.b32.xlu0 %v239, 126
        %v277 = vpop.permute.xlu0 %276
        %278 = vrot.lane.b32.xlu0 %v240, 126
        %v279 = vpop.permute.xlu0 %278
        %vm280 = vcmask 1031168
        %v281 = vsel %vm280, %v269, %v271
        %v282 = vsel %vm280, %v271, %v273
        %v283 = vsel %vm280, %v275, %v277
        %v284 = vsel %vm280, %v277, %v279
        %289 = vrot.lane.b32.xlu0 %v235, 125
        %v290 = vpop.permute.xlu0 %289
        %291 = vrot.lane.b32.xlu0 %v236, 125
        %v292 = vpop.permute.xlu0 %291
        %293 = vrot.lane.b32.xlu0 %v237, 125
        %v294 = vpop.permute.xlu0 %293
        %295 = vrot.lane.b32.xlu0 %v238, 125
        %v296 = vpop.permute.xlu0 %295
        %297 = vrot.lane.b32.xlu0 %v239, 125
        %v298 = vpop.permute.xlu0 %297
        %299 = vrot.lane.b32.xlu0 %v240, 125
        %v300 = vpop.permute.xlu0 %299
        %vm301 = vcmask 1022976
        %v302 = vsel %vm301, %v290, %v292
        %v303 = vsel %vm301, %v292, %v294
        %v304 = vsel %vm301, %v296, %v298
        %v305 = vsel %vm301, %v298, %v300
        %310 = vrot.lane.b32.xlu0 %v235, 124
        %v311 = vpop.permute.xlu0 %310
        %312 = vrot.lane.b32.xlu0 %v236, 124
        %v313 = vpop.permute.xlu0 %312
        %314 = vrot.lane.b32.xlu0 %v237, 124
        %v315 = vpop.permute.xlu0 %314
        %316 = vrot.lane.b32.xlu0 %v238, 124
        %v317 = vpop.permute.xlu0 %316
        %318 = vrot.lane.b32.xlu0 %v239, 124
        %v319 = vpop.permute.xlu0 %318
        %320 = vrot.lane.b32.xlu0 %v240, 124
        %v321 = vpop.permute.xlu0 %320
        %vm322 = vcmask 1014784
        %v323 = vsel %vm322, %v311, %v313
        %v324 = vsel %vm322, %v313, %v315
        %v325 = vsel %vm322, %v317, %v319
        %v326 = vsel %vm322, %v319, %v321
        %331 = vrot.lane.b32.xlu0 %v235, 123
        %v332 = vpop.permute.xlu0 %331
        %333 = vrot.lane.b32.xlu0 %v236, 123
        %v334 = vpop.permute.xlu0 %333
        %335 = vrot.lane.b32.xlu0 %v237, 123
        %v336 = vpop.permute.xlu0 %335
        %337 = vrot.lane.b32.xlu0 %v238, 123
        %v338 = vpop.permute.xlu0 %337
        %339 = vrot.lane.b32.xlu0 %v239, 123
        %v340 = vpop.permute.xlu0 %339
        %341 = vrot.lane.b32.xlu0 %v240, 123
        %v342 = vpop.permute.xlu0 %341
        %vm343 = vcmask 1006592
        %v344 = vsel %vm343, %v332, %v334
        %v345 = vsel %vm343, %v334, %v336
        %v346 = vsel %vm343, %v338, %v340
        %v347 = vsel %vm343, %v340, %v342
        %352 = vrot.lane.b32.xlu0 %v235, 122
        %v353 = vpop.permute.xlu0 %352
        %354 = vrot.lane.b32.xlu0 %v236, 122
        %v355 = vpop.permute.xlu0 %354
        %356 = vrot.lane.b32.xlu0 %v237, 122
        %v357 = vpop.permute.xlu0 %356
        %358 = vrot.lane.b32.xlu0 %v238, 122
        %v359 = vpop.permute.xlu0 %358
        %360 = vrot.lane.b32.xlu0 %v239, 122
        %v361 = vpop.permute.xlu0 %360
        %362 = vrot.lane.b32.xlu0 %v240, 122
        %v363 = vpop.permute.xlu0 %362
        %vm364 = vcmask 998400
        %v365 = vsel %vm364, %v353, %v355
        %v366 = vsel %vm364, %v355, %v357
        %v367 = vsel %vm364, %v359, %v361
        %v368 = vsel %vm364, %v361, %v363
        %373 = vrot.lane.b32.xlu0 %v235, 121
        %v374 = vpop.permute.xlu0 %373
        %375 = vrot.lane.b32.xlu0 %v236, 121
        %v376 = vpop.permute.xlu0 %375
        %377 = vrot.lane.b32.xlu0 %v237, 121
        %v378 = vpop.permute.xlu0 %377
        %379 = vrot.lane.b32.xlu0 %v238, 121
        %v380 = vpop.permute.xlu0 %379
        %381 = vrot.lane.b32.xlu0 %v239, 121
        %v382 = vpop.permute.xlu0 %381
        %383 = vrot.lane.b32.xlu0 %v240, 121
        %v384 = vpop.permute.xlu0 %383
        %vm385 = vcmask 990208
        %v386 = vsel %vm385, %v374, %v376
        %v387 = vsel %vm385, %v376, %v378
        %v388 = vsel %vm385, %v380, %v382
        %v389 = vsel %vm385, %v382, %v384
        %v394 = vpack.c.bf16 %v238, %v235
        %v395 = vpack.c.bf16 %v239, %v236
        %v396 = vpack.c.bf16 %v262, %v260
        %v397 = vpack.c.bf16 %v263, %v261
        %v398 = vpack.c.bf16 %v283, %v281
        %v399 = vpack.c.bf16 %v284, %v282
        %v400 = vpack.c.bf16 %v304, %v302
        %v401 = vpack.c.bf16 %v305, %v303
        %v402 = vpack.c.bf16 %v325, %v323
        %v403 = vpack.c.bf16 %v326, %v324
        %v404 = vpack.c.bf16 %v346, %v344
        %v405 = vpack.c.bf16 %v347, %v345
        %v406 = vpack.c.bf16 %v367, %v365
        %v407 = vpack.c.bf16 %v368, %v366
        %v408 = vpack.c.bf16 %v388, %v386
        %v409 = vpack.c.bf16 %v389, %v387
        %v410 = vld [vmem:[%s1] sm:$0xf]
        %v411 = vld [vmem:[%s1 + $0x4] sm:$0xf]
        %v412 = vld [vmem:[%s2] sm:$0xff]
        %v413 = vld [vmem:[%s2 + $0x8] sm:$0xff]
        %415 = vset.pattern.permute.xlu0 0
        %416 = vperm.xlu0 %415, %v412
        %v417 = vpop.permute.xlu0 %416
        %420 = vset.pattern.permute.xlu0 0
        %421 = vperm.xlu0 %420, %v413
        %v422 = vpop.permute.xlu0 %421
        %v426 = vunpack.c.l.b16 %v410
        %v427 = vunpack.c.l.b16 %v411
        %v428 = vpack.c.b16 %v427, %v426
        %430 = vmatpush.bf16.msra.mxu0 %v408
        %431 = vmatpush.bf16.msra.mxu0 %v406
        %432 = vmatpush.bf16.msra.mxu0 %v404
        %433 = vmatpush.bf16.msra.mxu0 %v402
        %434 = vmatpush.bf16.msra.mxu0 %v400
        %435 = vmatpush.bf16.msra.mxu0 %v398
        %436 = vmatpush.bf16.msra.mxu0 %v396
        %437 = vmatpush.bf16.msra.mxu0 %v394
        %438 = vmatmul.bf16.gmra.mxu0 %v428
        %v439 = vpop.f32.mrf.mxu0
        %v440 = vadd.f32 %v417, %v439
        %v441 = vpop.f32.mrf.mxu0
        %v442 = vadd.f32 %v422, %v441
        %443 = vdwg.mxu0
        %444 = vmatpush.bf16.msra.mxu0 %v409
        %445 = vmatpush.bf16.msra.mxu0 %v407
        %446 = vmatpush.bf16.msra.mxu0 %v405
        %447 = vmatpush.bf16.msra.mxu0 %v403
        %448 = vmatpush.bf16.msra.mxu0 %v401
        %449 = vmatpush.bf16.msra.mxu0 %v399
        %450 = vmatpush.bf16.msra.mxu0 %v397
        %451 = vmatpush.bf16.msra.mxu0 %v395
        %452 = vmatmul.bf16.gmra.mxu0 %v428
        %v453 = vpop.f32.mrf.mxu0
        %v454 = vadd.f32 %v417, %v453
        %v455 = vpop.f32.mrf.mxu0
        %v456 = vadd.f32 %v422, %v455
        %457 = vdwg.mxu0
        %v458 = vmax.f32 %v440, 0.0
        %v459 = vmax.f32 %v454, 0.0
        %v460 = vmax.f32 %v442, 0.0
        %v461 = vmax.f32 %v456, 0.0
        %v462 = vpack.c.bf16 %v460, %v458
        %v463 = vpack.c.bf16 %v461, %v459
        %v464 = vld [vmem:[#allocation5] sm:$0xff]
        %v465 = vld [vmem:[#allocation5 + $0x8] sm:$0xff]
        %v466 = vld [vmem:[#allocation5 + $0x10] sm:$0xff]
        %v467 = vld [vmem:[#allocation5 + $0x18] sm:$0xff]
        %v468 = vld [vmem:[#allocation5 + $0x20] sm:$0xff]
        %v469 = vld [vmem:[#allocation5 + $0x28] sm:$0xff]
        %v470 = vld [vmem:[#allocation5 + $0x30] sm:$0xff]
        %v471 = vld [vmem:[#allocation5 + $0x38] sm:$0xff]
        %v472 = vld [vmem:[#allocation5 + $0x40] sm:$0xff]
        %v473 = vld [vmem:[#allocation5 + $0x48] sm:$0xff]
        %v474 = vld [vmem:[#allocation5 + $0x50] sm:$0xff]
        %v475 = vld [vmem:[#allocation5 + $0x58] sm:$0xff]
        %v476 = vld [vmem:[#allocation5 + $0x60] sm:$0xff]
        %v477 = vld [vmem:[#allocation5 + $0x68] sm:$0xff]
        %v478 = vld [vmem:[#allocation5 + $0x70] sm:$0xff]
        %v479 = vld [vmem:[#allocation5 + $0x78] sm:$0xff]
        %v480 = vld [vmem:[#allocation5 + $0x80] sm:$0xff]
        %v481 = vld [vmem:[#allocation5 + $0x88] sm:$0xff]
        %v482 = vld [vmem:[#allocation5 + $0x90] sm:$0xff]
        %v483 = vld [vmem:[#allocation5 + $0x98] sm:$0xff]
        %v484 = vld [vmem:[#allocation5 + $0xa0] sm:$0xff]
        %v485 = vld [vmem:[#allocation5 + $0xa8] sm:$0xff]
        %v486 = vld [vmem:[#allocation5 + $0xb0] sm:$0xff]
        %v487 = vld [vmem:[#allocation5 + $0xb8] sm:$0xff]
        %v488 = vld [vmem:[#allocation5 + $0xc0] sm:$0xff]
        %v489 = vld [vmem:[#allocation5 + $0xc8] sm:$0xff]
        %v490 = vld [vmem:[#allocation5 + $0xd0] sm:$0xff]
        %v491 = vld [vmem:[#allocation5 + $0xd8] sm:$0xff]
        %v492 = vld [vmem:[#allocation5 + $0xe0] sm:$0xff]
        %v493 = vld [vmem:[#allocation5 + $0xe8] sm:$0xff]
        %v494 = vld [vmem:[#allocation5 + $0xf0] sm:$0xff]
        %v495 = vld [vmem:[#allocation5 + $0xf8] sm:$0xff]
        %v528 = vunpack.c.l.b16 %v464
        %v529 = vunpack.c.h.b16 %v464
        %v530 = vunpack.c.l.b16 %v465
        %v531 = vunpack.c.h.b16 %v465
        %v532 = vunpack.c.l.b16 %v466
        %v533 = vunpack.c.h.b16 %v466
        %v534 = vunpack.c.l.b16 %v467
        %v535 = vunpack.c.h.b16 %v467
        %v536 = vunpack.c.l.b16 %v468
        %v537 = vunpack.c.h.b16 %v468
        %v538 = vunpack.c.l.b16 %v469
        %v539 = vunpack.c.h.b16 %v469
        %v540 = vunpack.c.l.b16 %v470
        %v541 = vunpack.c.h.b16 %v470
        %v542 = vunpack.c.l.b16 %v471
        %v543 = vunpack.c.h.b16 %v471
        %v544 = vunpack.c.l.b16 %v472
        %v545 = vunpack.c.h.b16 %v472
        %v546 = vunpack.c.l.b16 %v473
        %v547 = vunpack.c.h.b16 %v473
        %v548 = vunpack.c.l.b16 %v474
        %v549 = vunpack.c.h.b16 %v474
        %v550 = vunpack.c.l.b16 %v475
        %v551 = vunpack.c.h.b16 %v475
        %v552 = vunpack.c.l.b16 %v476
        %v553 = vunpack.c.h.b16 %v476
        %v554 = vunpack.c.l.b16 %v477
        %v555 = vunpack.c.h.b16 %v477
        %v556 = vunpack.c.l.b16 %v478
        %v557 = vunpack.c.h.b16 %v478
        %v558 = vunpack.c.l.b16 %v479
        %v559 = vunpack.c.h.b16 %v479
        %v560 = vunpack.c.l.b16 %v480
        %v561 = vunpack.c.h.b16 %v480
        %v562 = vunpack.c.l.b16 %v481
        %v563 = vunpack.c.h.b16 %v481
        %v564 = vunpack.c.l.b16 %v482
        %v565 = vunpack.c.h.b16 %v482
        %v566 = vunpack.c.l.b16 %v483
        %v567 = vunpack.c.h.b16 %v483
        %v568 = vunpack.c.l.b16 %v484
        %v569 = vunpack.c.h.b16 %v484
        %v570 = vunpack.c.l.b16 %v485
        %v571 = vunpack.c.h.b16 %v485
        %v572 = vunpack.c.l.b16 %v486
        %v573 = vunpack.c.h.b16 %v486
        %v574 = vunpack.c.l.b16 %v487
        %v575 = vunpack.c.h.b16 %v487
        %v576 = vunpack.c.l.b16 %v488
        %v577 = vunpack.c.h.b16 %v488
        %v578 = vunpack.c.l.b16 %v489
        %v579 = vunpack.c.h.b16 %v489
        %v580 = vunpack.c.l.b16 %v490
        %v581 = vunpack.c.h.b16 %v490
        %v582 = vunpack.c.l.b16 %v491
        %v583 = vunpack.c.h.b16 %v491
        %v584 = vunpack.c.l.b16 %v492
        %v585 = vunpack.c.h.b16 %v492
        %v586 = vunpack.c.l.b16 %v493
        %v587 = vunpack.c.h.b16 %v493
        %v588 = vunpack.c.l.b16 %v494
        %v589 = vunpack.c.h.b16 %v494
        %v590 = vunpack.c.l.b16 %v495
        %v591 = vunpack.c.h.b16 %v495
        %v592 = vpack.c.b16 %v530, %v528
        %v593 = vpack.c.b16 %v531, %v529
        %v594 = vpack.c.b16 %v534, %v532
        %v595 = vpack.c.b16 %v535, %v533
        %v596 = vpack.c.b16 %v538, %v536
        %v597 = vpack.c.b16 %v539, %v537
        %v598 = vpack.c.b16 %v542, %v540
        %v599 = vpack.c.b16 %v543, %v541
        %v600 = vpack.c.b16 %v546, %v544
        %v601 = vpack.c.b16 %v547, %v545
        %v602 = vpack.c.b16 %v550, %v548
        %v603 = vpack.c.b16 %v551, %v549
        %v604 = vpack.c.b16 %v554, %v552
        %v605 = vpack.c.b16 %v555, %v553
        %v606 = vpack.c.b16 %v558, %v556
        %v607 = vpack.c.b16 %v559, %v557
        %v608 = vpack.c.b16 %v562, %v560
        %v609 = vpack.c.b16 %v563, %v561
        %v610 = vpack.c.b16 %v566, %v564
        %v611 = vpack.c.b16 %v567, %v565
        %v612 = vpack.c.b16 %v570, %v568
        %v613 = vpack.c.b16 %v571, %v569
        %v614 = vpack.c.b16 %v574, %v572
        %v615 = vpack.c.b16 %v575, %v573
        %v616 = vpack.c.b16 %v578, %v576
        %v617 = vpack.c.b16 %v579, %v577
        %v618 = vpack.c.b16 %v582, %v580
        %v619 = vpack.c.b16 %v583, %v581
        %v620 = vpack.c.b16 %v586, %v584
        %v621 = vpack.c.b16 %v587, %v585
        %v622 = vpack.c.b16 %v590, %v588
        %v623 = vpack.c.b16 %v591, %v589
        %656 = vmatpush.bf16.msra.mxu0 %v606
        %657 = vmatpush.bf16.msra.mxu0 %v604
        %658 = vmatpush.bf16.msra.mxu0 %v602
        %659 = vmatpush.bf16.msra.mxu0 %v600
        %660 = vmatpush.bf16.msra.mxu0 %v598
        %661 = vmatpush.bf16.msra.mxu0 %v596
        %662 = vmatpush.bf16.msra.mxu0 %v594
        %663 = vmatpush.bf16.msra.mxu0 %v592
        %664 = vmatmul.bf16.gmra.mxu0 %v462
        %v665 = vpop.f32.mrf.mxu0
        %v666 = vadd.f32 0.0, %v665
        %v667 = vpop.f32.mrf.mxu0
        %v668 = vadd.f32 0.0, %v667
        %669 = vdwg.mxu0
        %670 = vmatpush.bf16.msra.mxu0 %v622
        %671 = vmatpush.bf16.msra.mxu0 %v620
        %672 = vmatpush.bf16.msra.mxu0 %v618
        %673 = vmatpush.bf16.msra.mxu0 %v616
        %674 = vmatpush.bf16.msra.mxu0 %v614
        %675 = vmatpush.bf16.msra.mxu0 %v612
        %676 = vmatpush.bf16.msra.mxu0 %v610
        %677 = vmatpush.bf16.msra.mxu0 %v608
        %678 = vmatmul.bf16.gmra.mxu0 %v463
        %v679 = vpop.f32.mrf.mxu0
        %v680 = vadd.f32 %v666, %v679
        %v681 = vpop.f32.mrf.mxu0
        %v682 = vadd.f32 %v668, %v681
        %683 = vdwg.mxu0
        %684 = vmatpush.bf16.msra.mxu0 %v607
        %685 = vmatpush.bf16.msra.mxu0 %v605
        %686 = vmatpush.bf16.msra.mxu0 %v603
        %687 = vmatpush.bf16.msra.mxu0 %v601
        %688 = vmatpush.bf16.msra.mxu0 %v599
        %689 = vmatpush.bf16.msra.mxu0 %v597
        %690 = vmatpush.bf16.msra.mxu0 %v595
        %691 = vmatpush.bf16.msra.mxu0 %v593
        %692 = vmatmul.bf16.gmra.mxu0 %v462
        %v693 = vpop.f32.mrf.mxu0
        %v694 = vadd.f32 0.0, %v693
        %v695 = vpop.f32.mrf.mxu0
        %v696 = vadd.f32 0.0, %v695
        %697 = vdwg.mxu0
        %698 = vmatpush.bf16.msra.mxu0 %v623
        %699 = vmatpush.bf16.msra.mxu0 %v621
        %700 = vmatpush.bf16.msra.mxu0 %v619
        %701 = vmatpush.bf16.msra.mxu0 %v617
        %702 = vmatpush.bf16.msra.mxu0 %v615
        %703 = vmatpush.bf16.msra.mxu0 %v613
        %704 = vmatpush.bf16.msra.mxu0 %v611
        %705 = vmatpush.bf16.msra.mxu0 %v609
        %706 = vmatmul.bf16.gmra.mxu0 %v463
        %v707 = vpop.f32.mrf.mxu0
        %v708 = vadd.f32 %v694, %v707
        %v709 = vpop.f32.mrf.mxu0
        %v710 = vadd.f32 %v696, %v709
        %711 = vdwg.mxu0
        %v712 = vmax.f32 %v680, %v708
        %v713 = vmax.f32 %v682, %v710
        %714 = vst [vmem:[%s234] sm:$0xff] %v712
        %715 = vst [vmem:[%s234 + $0x8] sm:$0xff] %v713
        %s716 = sand.u32 %s119, 1
        %s717 = scalar_lea.sflag [#allocation4], %s716
        %s718 = sand.u32 %s119, 1
        %s719 = smul.addr %s718, 16
        %s720 = scalar_lea.vmem [#allocation7], %s719
        // Predicated region
        $region45: #{encoder3_forward.1} parent=35 // pred_check
          %p721 = pneg %p129
        $region46: #{encoder3_forward.1} parent=35 // pred_check_branch
          %723 = sbr.rel (%p721) target = $region48
        $region47: #{encoder3_forward.1} parent=35 // pred_region
          %725 = vsyncadd %s717, 0
          %s726 = smul.addr %s22, 2
          %s727 = smul.addr %s726, 8
          %s728 = scalar_lea.hbm %s4, %s727
          %s729 = sshll.u32 %s720, 4
          %s730 = int_to_ptr.vmem [resolvable:$true] %s729
          %s731 = sshll.u32 %s728, 4
          %s732 = int_to_ptr.hbm [resolvable:$true] %s731
          %737 = dma.vmem_to_hbm [thread:$0]  %s730, 256, %s732, %s717, 128, 128, 8
        $region48: #{encoder3_forward.1} parent=35 // pred_fallthru
          _
      $region36: #{encoder3_forward.1} parent=5 // pred_fallthru
        _
      %p738 = scmp.le.s32.totalorder 2, %s17
      // Predicated region
      $region49: #{encoder3_forward.1} parent=5 // pred_check
        %p739 = pneg %p738
      $region50: #{encoder3_forward.1} parent=5 // pred_check_branch
        %741 = sbr.rel (%p739) target = $region52
      $region51: #{encoder3_forward.1} parent=5 // pred_region
        %s742 = ssub.s32 %s17, 2
        // Predicated region
        $region53: #{encoder3_forward.1} parent=51 // pred_check
          %p743 = pneg %p135
        $region54: #{encoder3_forward.1} parent=51 // pred_check_branch
          %745 = sbr.rel (%p743) target = $region56
        $region55: #{encoder3_forward.1} parent=51 // pred_region
          %s746 = sand.u32 %s120, 1
          %s747 = scalar_lea.sflag [#allocation4], %s746
          %s748 = sand.u32 %s120, 1
          %s749 = smul.addr %s748, 16
          %s750 = scalar_lea.vmem [#allocation7], %s749
          %752 = dma.done %s747, 256
        $region56: #{encoder3_forward.1} parent=51 // pred_fallthru
          _
      $region52: #{encoder3_forward.1} parent=5 // pred_fallthru
        _
    $region6: #{encoder3_forward.1} parent=1 // loop_footer
      %s21 = sadd.s32 1, %s17
    $region7: #{encoder3_forward.1} parent=1 // loop_footer_branch
      %16 = sbr.rel target = $region3
    $region8: #{encoder3_forward.1} parent=1 // loop_exit
      _
    %753 = vsyncpa [#allocation3], 1
    %s754 = scalar_lea.sflag [#allocation3], 1
    %755 = vsyncpa %s754, 1
    %756 = vsyncpa [#allocation6], 1
    %757 = vsyncpa [#allocation4], 1
    %s758 = scalar_lea.sflag [#allocation4], 1
    %759 = vsyncpa %s758, 1

</llo_original>
